<compile_context>
chip_gen: v7x
topology: tpu7x:2x2x1
jax: 0.10.0
libtpu: 0.0.40
codegen_flags: <defaults>
</compile_context>

<pallas_src>
import functools

import jax
import jax.numpy as jnp
from jax.experimental import pallas as pl
from jax.experimental.pallas import tpu as pltpu


def _conv_stats_kernel(x_ref, w_ref, y_ref, ssum_ref, ssq_ref, xp_ref,
                       *, kw, pw, w_out):
    """One grid step == one sample.
    x_ref: (1, C, W) raw input block, w_ref: (kw, C_out, C_in) per-tap weights,
    y_ref: (1, C, w_out) conv output, ssum/ssq: (1, C, 1) BN partial sums,
    xp_ref: VMEM scratch (C, W + 1 + 2*pw) zero-padded slab."""
    C = x_ref.shape[1]
    W = x_ref.shape[2]
    wp = xp_ref.shape[1]

    # In-kernel padding (ZeroPad2d((0,1,0,0)) + Conv2d padding (0, pw)):
    # pw zeros on the left, pw+1 zeros on the right.  The unpadded block is DMA'd
    # in by the BlockSpec; no padded copy of x is ever materialized in HBM.
    if pw > 0:
        xp_ref[:, :pw] = jnp.zeros((C, pw), jnp.float32)
    xp_ref[:, pw + W:] = jnp.zeros((C, wp - pw - W), jnp.float32)
    xp_ref[:, pw:pw + W] = x_ref[0].astype(jnp.float32)

    # Conv2d(C, C, (1, kw), bias=False): kw shifted MXU dots, each over the full
    # time axis of this sample.  Accumulate as a value (no scratch round trip).
    acc = jnp.dot(w_ref[0], xp_ref[:, 0:w_out], preferred_element_type=jnp.float32)
    for k in range(1, kw):
        acc = acc + jnp.dot(w_ref[k], xp_ref[:, k:k + w_out],
                            preferred_element_type=jnp.float32)

    y_ref[0] = acc
    # One-pass BatchNorm statistics: per-channel sum and sum-of-squares.
    ssum_ref[0] = jnp.sum(acc, axis=-1, keepdims=True)
    ssq_ref[0] = jnp.sum(acc * acc, axis=-1, keepdims=True)


def _bn_elu_pool_kernel(y_ref, scale_ref, shift_ref, o_ref, *, p2, w_pool):
    """One grid step == one sample: fused affine BN + ELU + AvgPool2d((1, p2))."""
    C = y_ref.shape[1]
    # BatchNorm folded into a single per-channel scale/shift (one VPU pass).
    z = y_ref[0] * scale_ref[...] + shift_ref[...]
    # ELU (alpha = 1); clamp the false branch so exp never sees large positives.
    z = jnp.where(z > 0, z, jnp.expm1(jnp.minimum(z, 0.0)))
    # AvgPool as a VPU reshape + sum over the window axis (AvgPool2d floor mode:
    # trailing partial window dropped).  No MXU, no pooling-matrix input.
    zp = z[:, :w_pool * p2].reshape(C, w_pool, p2)
    o_ref[0] = (jnp.sum(zp, axis=-1) * (1.0 / p2)).astype(o_ref.dtype)


def base_temporal_module_forward(x, conv_w, gamma, beta, *, frequency, p2):
    """x: (N, C, 1, W) NCHW, conv_w: (C, C, 1, kw) OIHW, gamma/beta: (C,)."""
    N, C, H, W = x.shape
    assert H == 1, "EEGNet temporal stage expects H == 1"
    kern_length = frequency // 2
    kw = int(kern_length * 0.5)
    pw = kw // 2 - 1
    assert kw >= 1 and pw >= 0, \
        "frequency must be >= 16 (Conv2d padding would be negative otherwise)"

    wp = W + 1 + 2 * pw          # ZeroPad2d((0,1,0,0)) then Conv2d padding (0, pw)
    w_out = wp - kw + 1
    w_pool = w_out // p2
    assert w_pool >= 1

    x_ncw = x[:, :, 0, :].astype(jnp.float32)                         # (N, C, W)
    # conv weight (C_out, C_in, 1, kw) -> per-tap (kw, C_out, C_in)
    w_k = jnp.transpose(conv_w[:, :, 0, :], (2, 0, 1)).astype(jnp.float32)
    # TODO(synk): at production sizes feed x / w_k as bf16 (MXU-native) with
    # preferred_element_type=f32; kept f32 here to match the f32 reference tightly.

    conv_stats = functools.partial(_conv_stats_kernel, kw=kw, pw=pw, w_out=w_out)
    y, ssum, ssq = pl.pallas_call(
        conv_stats,
        out_shape=(jax.ShapeDtypeStruct((N, C, w_out), jnp.float32),
                   jax.ShapeDtypeStruct((N, C, 1), jnp.float32),
                   jax.ShapeDtypeStruct((N, C, 1), jnp.float32)),
        grid=(N,),
        in_specs=[pl.BlockSpec((1, C, W), lambda n: (n, 0, 0)),
                  pl.BlockSpec((kw, C, C), lambda n: (0, 0, 0))],
        out_specs=(pl.BlockSpec((1, C, w_out), lambda n: (n, 0, 0)),
                   pl.BlockSpec((1, C, 1), lambda n: (n, 0, 0)),
                   pl.BlockSpec((1, C, 1), lambda n: (n, 0, 0))),
        scratch_shapes=[pltpu.VMEM((C, wp), jnp.float32)],
        compiler_params=pltpu.CompilerParams(dimension_semantics=("parallel",)),
    )(x_ncw, w_k)

    # ---- BatchNorm2d(C, False): the 2nd positional arg is eps -> eps == 0.0,
    #      train-mode (biased) batch statistics, affine.  Folded into one
    #      per-channel scale/shift; this is (C,)-sized math.  Note: var == 0
    #      gives inf, matching the literal eps=0 PyTorch semantics. ----
    cnt = jnp.float32(N * w_out)
    mean = jnp.sum(ssum, axis=0) / cnt                                 # (C, 1)
    var = jnp.maximum(jnp.sum(ssq, axis=0) / cnt - mean * mean, 0.0)
    inv = jax.lax.rsqrt(var + 0.0)
    scale = gamma.reshape(C, 1).astype(jnp.float32) * inv
    shift = beta.reshape(C, 1).astype(jnp.float32) - mean * scale

    bn_pool = functools.partial(_bn_elu_pool_kernel, p2=p2, w_pool=w_pool)
    out = pl.pallas_call(
        bn_pool,
        out_shape=jax.ShapeDtypeStruct((N, C, w_pool), x.dtype),
        grid=(N,),
        in_specs=[pl.BlockSpec((1, C, w_out), lambda n: (n, 0, 0)),
                  pl.BlockSpec((C, 1), lambda n: (0, 0)),
                  pl.BlockSpec((C, 1), lambda n: (0, 0))],
        out_specs=pl.BlockSpec((1, C, w_pool), lambda n: (n, 0, 0)),
        compiler_params=pltpu.CompilerParams(dimension_semantics=("parallel",)),
    )(y, scale, shift)
    # TODO(synk): nn.Dropout is stochastic at train time; applied as identity
    # (eval-mode semantics).  BatchNorm running-stat (momentum) updates are not
    # emitted.  At production W, add a second grid axis tiling w_out (multiples of
    # 128*p2) so per-step blocks fit v7x's 64 MiB VMEM.
    return out


def reference_forward(x, conv_w, gamma, beta, *, frequency, p2):
    """Pure-JAX reference mirroring the PyTorch module (train-mode BN, eval dropout)."""
    kern_length = frequency // 2
    kw = int(kern_length * 0.5)
    pw = kw // 2 - 1
    xp = jnp.pad(x, ((0, 0), (0, 0), (0, 0), (0, 1)))          # ZeroPad2d((0,1,0,0))
    y = jax.lax.conv_general_dilated(
        xp.astype(jnp.float32), conv_w.astype(jnp.float32),
        window_strides=(1, 1), padding=((0, 0), (pw, pw)),
        dimension_numbers=("NCHW", "OIHW", "NCHW"))
    mean = y.mean(axis=(0, 2, 3), keepdims=True)
    var = ((y - mean) ** 2).mean(axis=(0, 2, 3), keepdims=True)
    y = (y - mean) / jnp.sqrt(var + 0.0) * gamma.reshape(1, -1, 1, 1) \
        + beta.reshape(1, -1, 1, 1)
    y = jax.nn.elu(y)
    N, C, H, Wc = y.shape
    wpool = Wc // p2
    y = y[..., :wpool * p2].reshape(N, C, H, wpool, p2).mean(-1)
    return y.squeeze(2)


if __name__ == "__main__":
    # config: frequency=16, num_kernels=2, D=5, p2=4, dropout=0.25
    frequency, num_kernels, D, p2 = 16, 2, 5, 4
    C = num_kernels * D                                  # 10
    N, W = 2, 16
    kern_length = frequency // 2
    kw = int(kern_length * 0.5)                          # 4

    key = jax.random.PRNGKey(0)
    kx, kw_, kg, kb = jax.random.split(key, 4)
    x = jax.random.normal(kx, (N, C, 1, W), dtype=jnp.float32)
    conv_w = 0.1 * jax.random.normal(kw_, (C, C, 1, kw), dtype=jnp.float32)
    gamma = 1.0 + 0.1 * jax.random.normal(kg, (C,), dtype=jnp.float32)
    beta = 0.1 * jax.random.normal(kb, (C,), dtype=jnp.float32)

    out = base_temporal_module_forward(x, conv_w, gamma, beta,
                                       frequency=frequency, p2=p2)
    out = jax.block_until_ready(out)

    ref = reference_forward(x, conv_w, gamma, beta, frequency=frequency, p2=p2)
    ref = jax.block_until_ready(ref)

    assert out.shape == (N, C, W // p2), out.shape
    err = float(jnp.max(jnp.abs(out - ref)))
    assert err < 1e-4, f"max abs err {err}"
    print("KERNEL_OK")
</pallas_src>

<mosaic_0001>
module attributes {stable_mosaic.version = 11 : i64} {
  func.func @_conv_stats_kernel(%arg0: i32, %arg1: memref<1x10x16xf32, #tpu.memory_space<vmem>>, %arg2: memref<4x10x10xf32, #tpu.memory_space<vmem>>, %arg3: memref<1x10x16xf32, #tpu.memory_space<vmem>>, %arg4: memref<1x10x1xf32, #tpu.memory_space<vmem>>, %arg5: memref<1x10x1xf32, #tpu.memory_space<vmem>>, %arg6: memref<10x19xf32, #tpu.memory_space<vmem>>) attributes {dimension_semantics = [#tpu.dimension_semantics<parallel>], iteration_bounds = array<i64: 2>, scalar_prefetch = 0 : i64, scratch_operands = 1 : i64, tpu.core_type = #tpu.core_type<tc>, window_params = [{transform_indices = @transform_0, window_bounds = array<i64: 1, 10, 16>}, {pipeline_mode = #tpu.pipeline_mode<synchronous>, transform_indices = @transform_1, window_bounds = array<i64: 4, 10, 10>}, {transform_indices = @transform_2, window_bounds = array<i64: 1, 10, 16>}, {transform_indices = @transform_3, window_bounds = array<i64: 1, 10, 1>}, {transform_indices = @transform_4, window_bounds = array<i64: 1, 10, 1>}]} {
    %cst = arith.constant 0.000000e+00 : f32
    %0 = vector.broadcast %cst : f32 to vector<10x1xf32>
    %c0 = arith.constant 0 : index
    %c0_0 = arith.constant 0 : index
    %1 = vector.load %arg6[%c0, %c0_0] : memref<10x19xf32, #tpu.memory_space<vmem>>, vector<10x1xf32>
    tpu.vector_store %arg6[%c0, %c0_0], %0 {strides = array<i32>} : memref<10x19xf32, #tpu.memory_space<vmem>>, vector<10x1xf32>,
    %cst_1 = arith.constant 0.000000e+00 : f32
    %2 = vector.broadcast %cst_1 : f32 to vector<10x2xf32>
    %c0_2 = arith.constant 0 : index
    %c17 = arith.constant 17 : index
    %3 = vector.load %arg6[%c0_2, %c17] : memref<10x19xf32, #tpu.memory_space<vmem>>, vector<10x2xf32>
    tpu.vector_store %arg6[%c0_2, %c17], %2 {strides = array<i32>} : memref<10x19xf32, #tpu.memory_space<vmem>>, vector<10x2xf32>,
    %c0_3 = arith.constant 0 : index
    %c0_4 = arith.constant 0 : index
    %c0_5 = arith.constant 0 : index
    %4 = vector.load %arg1[%c0_3, %c0_4, %c0_5] : memref<1x10x16xf32, #tpu.memory_space<vmem>>, vector<1x10x16xf32>
    %5 = vector.shape_cast %4 : vector<1x10x16xf32> to vector<10x16xf32>
    %c0_6 = arith.constant 0 : index
    %c1 = arith.constant 1 : index
    %6 = vector.load %arg6[%c0_6, %c1] : memref<10x19xf32, #tpu.memory_space<vmem>>, vector<10x16xf32>
    tpu.vector_store %arg6[%c0_6, %c1], %5 {strides = array<i32>} : memref<10x19xf32, #tpu.memory_space<vmem>>, vector<10x16xf32>,
    %c0_7 = arith.constant 0 : index
    %c0_8 = arith.constant 0 : index
    %c0_9 = arith.constant 0 : index
    %7 = vector.load %arg2[%c0_7, %c0_8, %c0_9] : memref<4x10x10xf32, #tpu.memory_space<vmem>>, vector<1x10x10xf32>
    %8 = vector.shape_cast %7 : vector<1x10x10xf32> to vector<10x10xf32>
    %c0_10 = arith.constant 0 : index
    %c0_11 = arith.constant 0 : index
    %9 = vector.load %arg6[%c0_10, %c0_11] : memref<10x19xf32, #tpu.memory_space<vmem>>, vector<10x16xf32>
    %cst_12 = arith.constant dense<0.000000e+00> : vector<10x16xf32>
    %10 = tpu.matmul %8, %9, %cst_12 {dimension_numbers = #tpu.dot_dimension_numbers<[1], [0], [0], [1], [0, 0, 1, 1], [], []>} : vector<10x10xf32>, vector<10x16xf32>, vector<10x16xf32> -> vector<10x16xf32>
    %c1_13 = arith.constant 1 : index
    %c0_14 = arith.constant 0 : index
    %c0_15 = arith.constant 0 : index
    %11 = vector.load %arg2[%c1_13, %c0_14, %c0_15] : memref<4x10x10xf32, #tpu.memory_space<vmem>>, vector<1x10x10xf32>
    %12 = vector.shape_cast %11 : vector<1x10x10xf32> to vector<10x10xf32>
    %c0_16 = arith.constant 0 : index
    %c1_17 = arith.constant 1 : index
    %13 = vector.load %arg6[%c0_16, %c1_17] : memref<10x19xf32, #tpu.memory_space<vmem>>, vector<10x16xf32>
    %cst_18 = arith.constant dense<0.000000e+00> : vector<10x16xf32>
    %14 = tpu.matmul %12, %13, %cst_18 {dimension_numbers = #tpu.dot_dimension_numbers<[1], [0], [0], [1], [0, 0, 1, 1], [], []>} : vector<10x10xf32>, vector<10x16xf32>, vector<10x16xf32> -> vector<10x16xf32>
    %15 = arith.addf %10, %14 : vector<10x16xf32>
    %c2 = arith.constant 2 : index
    %c0_19 = arith.constant 0 : index
    %c0_20 = arith.constant 0 : index
    %16 = vector.load %arg2[%c2, %c0_19, %c0_20] : memref<4x10x10xf32, #tpu.memory_space<vmem>>, vector<1x10x10xf32>
    %17 = vector.shape_cast %16 : vector<1x10x10xf32> to vector<10x10xf32>
    %c0_21 = arith.constant 0 : index
    %c2_22 = arith.constant 2 : index
    %18 = vector.load %arg6[%c0_21, %c2_22] : memref<10x19xf32, #tpu.memory_space<vmem>>, vector<10x16xf32>
    %cst_23 = arith.constant dense<0.000000e+00> : vector<10x16xf32>
    %19 = tpu.matmul %17, %18, %cst_23 {dimension_numbers = #tpu.dot_dimension_numbers<[1], [0], [0], [1], [0, 0, 1, 1], [], []>} : vector<10x10xf32>, vector<10x16xf32>, vector<10x16xf32> -> vector<10x16xf32>
    %20 = arith.addf %15, %19 : vector<10x16xf32>
    %c3 = arith.constant 3 : index
    %c0_24 = arith.constant 0 : index
    %c0_25 = arith.constant 0 : index
    %21 = vector.load %arg2[%c3, %c0_24, %c0_25] : memref<4x10x10xf32, #tpu.memory_space<vmem>>, vector<1x10x10xf32>
    %22 = vector.shape_cast %21 : vector<1x10x10xf32> to vector<10x10xf32>
    %c0_26 = arith.constant 0 : index
    %c3_27 = arith.constant 3 : index
    %23 = vector.load %arg6[%c0_26, %c3_27] : memref<10x19xf32, #tpu.memory_space<vmem>>, vector<10x16xf32>
    %cst_28 = arith.constant dense<0.000000e+00> : vector<10x16xf32>
    %24 = tpu.matmul %22, %23, %cst_28 {dimension_numbers = #tpu.dot_dimension_numbers<[1], [0], [0], [1], [0, 0, 1, 1], [], []>} : vector<10x10xf32>, vector<10x16xf32>, vector<10x16xf32> -> vector<10x16xf32>
    %25 = arith.addf %20, %24 : vector<10x16xf32>
    %c0_29 = arith.constant 0 : index
    %c0_30 = arith.constant 0 : index
    %c0_31 = arith.constant 0 : index
    %26 = vector.load %arg3[%c0_29, %c0_30, %c0_31] : memref<1x10x16xf32, #tpu.memory_space<vmem>>, vector<1x10x16xf32>
    %27 = vector.shape_cast %26 : vector<1x10x16xf32> to vector<10x16xf32>
    %28 = vector.shape_cast %25 : vector<10x16xf32> to vector<1x10x16xf32>
    tpu.vector_store %arg3[%c0_29, %c0_30, %c0_31], %28 {strides = array<i32>} : memref<1x10x16xf32, #tpu.memory_space<vmem>>, vector<1x10x16xf32>,
    %cst_32 = arith.constant dense<0.000000e+00> : vector<10xf32>
    %29 = vector.multi_reduction <add>, %25, %cst_32 [1] : vector<10x16xf32> to vector<10xf32>
    %30 = vector.shape_cast %29 : vector<10xf32> to vector<10x1xf32>
    %c0_33 = arith.constant 0 : index
    %c0_34 = arith.constant 0 : index
    %c0_35 = arith.constant 0 : index
    %31 = vector.load %arg4[%c0_33, %c0_34, %c0_35] : memref<1x10x1xf32, #tpu.memory_space<vmem>>, vector<1x10x1xf32>
    %32 = vector.shape_cast %31 : vector<1x10x1xf32> to vector<10x1xf32>
    %33 = vector.shape_cast %30 : vector<10x1xf32> to vector<1x10x1xf32>
    tpu.vector_store %arg4[%c0_33, %c0_34, %c0_35], %33 {strides = array<i32>} : memref<1x10x1xf32, #tpu.memory_space<vmem>>, vector<1x10x1xf32>,
    %34 = arith.mulf %25, %25 : vector<10x16xf32>
    %cst_36 = arith.constant dense<0.000000e+00> : vector<10xf32>
    %35 = vector.multi_reduction <add>, %34, %cst_36 [1] : vector<10x16xf32> to vector<10xf32>
    %36 = vector.shape_cast %35 : vector<10xf32> to vector<10x1xf32>
    %c0_37 = arith.constant 0 : index
    %c0_38 = arith.constant 0 : index
    %c0_39 = arith.constant 0 : index
    %37 = vector.load %arg5[%c0_37, %c0_38, %c0_39] : memref<1x10x1xf32, #tpu.memory_space<vmem>>, vector<1x10x1xf32>
    %38 = vector.shape_cast %37 : vector<1x10x1xf32> to vector<10x1xf32>
    %39 = vector.shape_cast %36 : vector<10x1xf32> to vector<1x10x1xf32>
    tpu.vector_store %arg5[%c0_37, %c0_38, %c0_39], %39 {strides = array<i32>} : memref<1x10x1xf32, #tpu.memory_space<vmem>>, vector<1x10x1xf32>,
    return
  }
  func.func @transform_0(%arg0: i32) -> (i32, i32, i32) {
    %c0_i32 = arith.constant 0 : i32
    %c0_i32_0 = arith.constant 0 : i32
    %c0_i32_1 = arith.constant 0 : i32
    return %arg0, %c0_i32, %c0_i32_0 : i32, i32, i32
  }
  func.func @transform_1(%arg0: i32) -> (i32, i32, i32) {
    %c0_i32 = arith.constant 0 : i32
    %c0_i32_0 = arith.constant 0 : i32
    %c0_i32_1 = arith.constant 0 : i32
    %c0_i32_2 = arith.constant 0 : i32
    return %c0_i32, %c0_i32_0, %c0_i32_1 : i32, i32, i32
  }
  func.func @transform_2(%arg0: i32) -> (i32, i32, i32) {
    %c0_i32 = arith.constant 0 : i32
    %c0_i32_0 = arith.constant 0 : i32
    %c0_i32_1 = arith.constant 0 : i32
    return %arg0, %c0_i32, %c0_i32_0 : i32, i32, i32
  }
  func.func @transform_3(%arg0: i32) -> (i32, i32, i32) {
    %c0_i32 = arith.constant 0 : i32
    %c0_i32_0 = arith.constant 0 : i32
    %c0_i32_1 = arith.constant 0 : i32
    return %arg0, %c0_i32, %c0_i32_0 : i32, i32, i32
  }
  func.func @transform_4(%arg0: i32) -> (i32, i32, i32) {
    %c0_i32 = arith.constant 0 : i32
    %c0_i32_0 = arith.constant 0 : i32
    %c0_i32_1 = arith.constant 0 : i32
    return %arg0, %c0_i32, %c0_i32_0 : i32, i32, i32
  }
}

</mosaic_0001>

<llo_original>
// kernel: tpu_custom_call.1
$region0: #{tpu_custom_call.1}
  #allocation0 [shape = 'u32[]', space=smem, size = 0x4, offset = 0x4, fixed_abs, tag = 'smem constant byte address 0x4 - core index']
  #allocation1 [shape = 'u32[144,128]{1,0:T(1,128)}', space=vmem, size = 0x12000, scoped, tag = 'internal scratch']
  #allocation2 [shape = 'f32[10,19]{1,0:T(8,128)}', space=vmem, size = 0x2000, scoped, tag = 'scratch operand']
  %s0 = inlined_call_operand.vmem [shape: f32[2,10,16], index: 0, kind: input, shape index: {}]
  %s1 = inlined_call_operand.vmem [shape: f32[4,10,10], index: 1, kind: input, shape index: {}]
  %s2 = inlined_call_operand.vmem [shape: f32[2,10,16], index: 2, kind: output, shape index: {0}]
  %s3 = inlined_call_operand.vmem [shape: f32[2,10,1], index: 3, kind: output, shape index: {1}]
  %s4 = inlined_call_operand.vmem [shape: f32[2,10,1], index: 4, kind: output, shape index: {2}]
  %5 = xla_tuple %s2, %s3, %s4
  %s6 = sld [smem:[#allocation0]]
  $region57: #{tpu_custom_call.1} parent=0
    _
  %s8 = ssub.s32 1, %s6
  %s9 = scalar_select 0, %s8, %s6
  loop: start=0, step=1, limit=4
  $region2: #{tpu_custom_call.1} parent=0 // loop_pre_header
    _
  $region3: #{tpu_custom_call.1} parent=0 // loop_header
    %s11 = sphi 0, %s15
    %p12 = scmp.ge.s32.totalorder %s11, 4
    %s21 = sphi 0, %s23
    %s24 = sphi 0, %s21
    %s25 = sphi 0, %s24
    %s41 = sphi 0, %s25
    %s45 = sphi 0, %s45
    %s47 = sphi 0, %s45
    %s48 = sphi 0, %s47
    %s62 = sphi 0, %s48
    %s68 = sphi 0, %s70
    %s71 = sphi 0, %s68
    %s72 = sphi 0, %s71
    %s88 = sphi 0, %s72
    %s94 = sphi 0, %s96
    %s97 = sphi 0, %s94
    %s98 = sphi 0, %s97
    %s114 = sphi 0, %s98
    %s120 = sphi 0, %s122
    %s123 = sphi 0, %s120
    %s124 = sphi 0, %s123
    %s140 = sphi 0, %s124
  $region4: #{tpu_custom_call.1} parent=0 // loop_header_branch
    %14 = sbr.rel (%p12) target = $region8
  $region5: #{tpu_custom_call.1} parent=0 // loop_body
    %s16 = ssub.s32 %s11, 1
    %s17 = ssub.s32 %s11, 2
    %s18 = sadd.s32 %s11, 1
    %s19 = ssub.s32 %s11, %s18
    %p20 = scmp.eq.s32.totalorder %s19, 0
    %s22 = sadd.s32 %s21, 1
    %s23 = scalar_select %p20, %s21, %s22
    %p26 = pneg %p20
    %p27 = scmp.eq.s32.totalorder %s11, 1
    %p28 = por %p26, %p27
    %p29 = scmp.ne.s32.totalorder %s21, %s24
    %p30 = scmp.eq.s32.totalorder %s11, 0
    %p31 = por %p29, %p30
    %p32 = scmp.ne.s32.totalorder %s21, %s24
    %p33 = scmp.eq.s32.totalorder %s16, 1
    %p34 = por %p32, %p33
    %p35 = scmp.ne.s32.totalorder %s24, %s25
    %p36 = scmp.eq.s32.totalorder %s16, 0
    %p37 = por %p35, %p36
    %p38 = scmp.ne.s32.totalorder %s24, %s25
    %p39 = scmp.eq.s32.totalorder %s17, 1
    %p40 = por %p38, %p39
    %p42 = scmp.ne.s32.totalorder %s25, %s41
    %p43 = scmp.eq.s32.totalorder %s17, 0
    %p44 = por %p42, %p43
    %s46 = sadd.s32 %s45, 1
    %p49 = scmp.eq.s32.totalorder %s11, 1
    %p50 = scmp.ne.s32.totalorder %s45, %s47
    %p51 = scmp.eq.s32.totalorder %s11, 0
    %p52 = por %p50, %p51
    %p53 = scmp.ne.s32.totalorder %s45, %s47
    %p54 = scmp.eq.s32.totalorder %s16, 1
    %p55 = por %p53, %p54
    %p56 = scmp.ne.s32.totalorder %s47, %s48
    %p57 = scmp.eq.s32.totalorder %s16, 0
    %p58 = por %p56, %p57
    %p59 = scmp.ne.s32.totalorder %s47, %s48
    %p60 = scmp.eq.s32.totalorder %s17, 1
    %p61 = por %p59, %p60
    %p63 = scmp.ne.s32.totalorder %s48, %s62
    %p64 = scmp.eq.s32.totalorder %s17, 0
    %p65 = por %p63, %p64
    %s66 = ssub.s32 %s11, %s18
    %p67 = scmp.eq.s32.totalorder %s66, 0
    %s69 = sadd.s32 %s68, 1
    %s70 = scalar_select %p67, %s68, %s69
    %p73 = pneg %p67
    %p74 = scmp.eq.s32.totalorder %s11, 1
    %p75 = por %p73, %p74
    %p76 = scmp.ne.s32.totalorder %s68, %s71
    %p77 = scmp.eq.s32.totalorder %s11, 0
    %p78 = por %p76, %p77
    %p79 = scmp.ne.s32.totalorder %s68, %s71
    %p80 = scmp.eq.s32.totalorder %s16, 1
    %p81 = por %p79, %p80
    %p82 = scmp.ne.s32.totalorder %s71, %s72
    %p83 = scmp.eq.s32.totalorder %s16, 0
    %p84 = por %p82, %p83
    %p85 = scmp.ne.s32.totalorder %s71, %s72
    %p86 = scmp.eq.s32.totalorder %s17, 1
    %p87 = por %p85, %p86
    %p89 = scmp.ne.s32.totalorder %s72, %s88
    %p90 = scmp.eq.s32.totalorder %s17, 0
    %p91 = por %p89, %p90
    %s92 = ssub.s32 %s11, %s18
    %p93 = scmp.eq.s32.totalorder %s92, 0
    %s95 = sadd.s32 %s94, 1
    %s96 = scalar_select %p93, %s94, %s95
    %p99 = pneg %p93
    %p100 = scmp.eq.s32.totalorder %s11, 1
    %p101 = por %p99, %p100
    %p102 = scmp.ne.s32.totalorder %s94, %s97
    %p103 = scmp.eq.s32.totalorder %s11, 0
    %p104 = por %p102, %p103
    %p105 = scmp.ne.s32.totalorder %s94, %s97
    %p106 = scmp.eq.s32.totalorder %s16, 1
    %p107 = por %p105, %p106
    %p108 = scmp.ne.s32.totalorder %s97, %s98
    %p109 = scmp.eq.s32.totalorder %s16, 0
    %p110 = por %p108, %p109
    %p111 = scmp.ne.s32.totalorder %s97, %s98
    %p112 = scmp.eq.s32.totalorder %s17, 1
    %p113 = por %p111, %p112
    %p115 = scmp.ne.s32.totalorder %s98, %s114
    %p116 = scmp.eq.s32.totalorder %s17, 0
    %p117 = por %p115, %p116
    %s118 = ssub.s32 %s11, %s18
    %p119 = scmp.eq.s32.totalorder %s118, 0
    %s121 = sadd.s32 %s120, 1
    %s122 = scalar_select %p119, %s120, %s121
    %p125 = pneg %p119
    %p126 = scmp.eq.s32.totalorder %s11, 1
    %p127 = por %p125, %p126
    %p128 = scmp.ne.s32.totalorder %s120, %s123
    %p129 = scmp.eq.s32.totalorder %s11, 0
    %p130 = por %p128, %p129
    %p131 = scmp.ne.s32.totalorder %s120, %s123
    %p132 = scmp.eq.s32.totalorder %s16, 1
    %p133 = por %p131, %p132
    %p134 = scmp.ne.s32.totalorder %s123, %s124
    %p135 = scmp.eq.s32.totalorder %s16, 0
    %p136 = por %p134, %p135
    %p137 = scmp.ne.s32.totalorder %s123, %s124
    %p138 = scmp.eq.s32.totalorder %s17, 1
    %p139 = por %p137, %p138
    %p141 = scmp.ne.s32.totalorder %s124, %s140
    %p142 = scmp.eq.s32.totalorder %s17, 0
    %p143 = por %p141, %p142
    %p144 = scmp.le.s32.totalorder 1, %s11
    %p145 = scmp.lt.s32.totalorder %s11, 3
    %p146 = pnand %p144, %p145
    %p147 = pneg %p146
    // Predicated region
    $region9: #{tpu_custom_call.1} parent=5 // pred_check
      _
    $region10: #{tpu_custom_call.1} parent=5 // pred_check_branch
      %149 = sbr.rel (%p146) target = $region12
    $region11: #{tpu_custom_call.1} parent=5 // pred_region
      %s150 = ssub.s32 %s11, 1
      // Predicated region
      $region13: #{tpu_custom_call.1} parent=11 // pred_check
        %p151 = pneg %p58
      $region14: #{tpu_custom_call.1} parent=11 // pred_check_branch
        %153 = sbr.rel (%p151) target = $region16
      $region15: #{tpu_custom_call.1} parent=11 // pred_region
        _
      $region16: #{tpu_custom_call.1} parent=11 // pred_fallthru
        _
    $region12: #{tpu_custom_call.1} parent=5 // pred_fallthru
      _
    %p154 = scmp.lt.s32.totalorder %s11, 2
    // Predicated region
    $region17: #{tpu_custom_call.1} parent=5 // pred_check
      %p155 = pneg %p154
    $region18: #{tpu_custom_call.1} parent=5 // pred_check_branch
      %157 = sbr.rel (%p155) target = $region20
    $region19: #{tpu_custom_call.1} parent=5 // pred_region
      // Predicated region
      $region21: #{tpu_custom_call.1} parent=19 // pred_check
        %p158 = pneg %p31
      $region22: #{tpu_custom_call.1} parent=19 // pred_check_branch
        %160 = sbr.rel (%p158) target = $region24
      $region23: #{tpu_custom_call.1} parent=19 // pred_region
        %p161 = scmp.lt.s32.totalorder %s11, 1
        %s162 = scalar_select %p161, %s11, 1
        %s163 = smul.addr %s162, 2
        %s164 = smul.addr %s163, 8
        %s165 = scalar_lea.vmem %s0, %s164
      $region24: #{tpu_custom_call.1} parent=19 // pred_fallthru
        _
    $region20: #{tpu_custom_call.1} parent=5 // pred_fallthru
      _
    %p166 = scmp.le.s32.totalorder 1, %s11
    %p167 = scmp.lt.s32.totalorder %s11, 3
    %p168 = pnand %p166, %p167
    %p169 = pneg %p168
    // Predicated region
    $region25: #{tpu_custom_call.1} parent=5 // pred_check
      _
    $region26: #{tpu_custom_call.1} parent=5 // pred_check_branch
      %171 = sbr.rel (%p168) target = $region28
    $region27: #{tpu_custom_call.1} parent=5 // pred_region
      %s172 = ssub.s32 %s11, 1
      %p173 = scmp.lt.s32.totalorder %s16, 1
      %s174 = scalar_select %p173, %s16, 1
      %s175 = smul.addr %s174, 2
      %s176 = smul.addr %s175, 8
      %s177 = scalar_lea.vmem %s0, %s176
      %p178 = pneg %p37
      %p179 = pneg %p34
      %p180 = pneg %p58
      %p181 = pneg %p55
      %p182 = pneg %p84
      %p183 = pneg %p81
      %p184 = scmp.lt.s32.totalorder %s16, 1
      %s185 = scalar_select %p184, %s16, 1
      %s186 = smul.addr %s185, 2
      %s187 = smul.addr %s186, 8
      %s188 = scalar_lea.vmem %s2, %s187
      %p189 = pneg %p110
      %p190 = pneg %p107
      %p191 = scmp.lt.s32.totalorder %s16, 1
      %s192 = scalar_select %p191, %s16, 1
      %s193 = smul.addr %s192, 2
      %s194 = smul.addr %s193, 8
      %s195 = scalar_lea.vmem %s3, %s194
      %p196 = pneg %p136
      %p197 = pneg %p133
      %p198 = scmp.lt.s32.totalorder %s16, 1
      %s199 = scalar_select %p198, %s16, 1
      %s200 = smul.addr %s199, 2
      %s201 = smul.addr %s200, 8
      %s202 = scalar_lea.vmem %s4, %s201
      %p203 = scmp.lt.s32.totalorder %s16, 1
      %s204 = scalar_select %p203, %s16, 1
      %s205 = smul.addr %s204, 2
      %s206 = smul.addr %s205, 8
      %s207 = scalar_lea.vmem %s0, %s206
      %p208 = scmp.lt.s32.totalorder %s16, 1
      %s209 = scalar_select %p208, %s16, 1
      %s210 = smul.addr %s209, 2
      %s211 = smul.addr %s210, 8
      %s212 = scalar_lea.vmem %s2, %s211
      %p213 = scmp.lt.s32.totalorder %s16, 1
      %s214 = scalar_select %p213, %s16, 1
      %s215 = smul.addr %s214, 2
      %s216 = smul.addr %s215, 8
      %s217 = scalar_lea.vmem %s3, %s216
      %p218 = scmp.lt.s32.totalorder %s16, 1
      %s219 = scalar_select %p218, %s16, 1
      %s220 = smul.addr %s219, 2
      %s221 = smul.addr %s220, 8
      %s222 = scalar_lea.vmem %s4, %s221
      %vm223 = vcmask 7168
      %224 = vst.msk [vmem:[#allocation2] sm:$0xff] %vm223, 0.0
      %vm225 = vcmask 1024
      %226 = vst.msk [vmem:[#allocation2 + $0x8] sm:$0x3] %vm225, 0.0
      %vm227 = vcmask 154760
      %228 = vst.msk [vmem:[#allocation2] sm:$0xff] %vm227, 0.0
      %vm229 = vcmask 148616
      %230 = vst.msk [vmem:[#allocation2 + $0x8] sm:$0x3] %vm229, 0.0
      %v231 = vld [vmem:[%s207] sm:$0xff]
      %v232 = vld [vmem:[%s207 + $0x8] sm:$0x3]
      %235 = vrot.lane.b32.xlu0 %v231, 1
      %v236 = vpop.permute.xlu0 %235
      %237 = vrot.lane.b32.xlu0 %v232, 1
      %v238 = vpop.permute.xlu0 %237
      %vm241 = vcmask 138248
      %242 = vst.msk [vmem:[#allocation2] sm:$0xff] %vm241, %v236
      %vm243 = vcmask 132104
      %244 = vst.msk [vmem:[#allocation2 + $0x8] sm:$0x3] %vm243, %v238
      %v245 = vld [vmem:[%s1] sm:$0xff]
      %v246 = vld [vmem:[%s1 + $0x8] sm:$0x3]
      %v247 = vld [vmem:[#allocation2] sm:$0xff]
      %v248 = vld [vmem:[#allocation2 + $0x8] sm:$0x3]
      %s249 = scalar_lea.vmem %s1, 16
      %v250 = vld [vmem:[%s249] sm:$0xff]
      %v251 = vld [vmem:[%s249 + $0x8] sm:$0x3]
      %254 = vrot.lane.b32.xlu0 %v247, 127
      %v255 = vpop.permute.xlu0 %254
      %256 = vrot.lane.b32.xlu0 %v248, 127
      %v257 = vpop.permute.xlu0 %256
      %vm259 = vcmask 80896
      %v261 = vsel %vm259, %v250, 0
      %v264 = vsel %vm259, %v251, 0
      %vm266 = vcmask 1041408
      %v267 = vsel %vm266, %v257, 0
      %269 = vmatprep.subr.mxu0 0.0
      %270 = vmatpush1.msra.mxu0 %v255
      %271 = vmatprep.subr.mxu0 0.0
      %272 = vmatpush1.msra.mxu0 %v267
      %273 = vmatprep.subr.mxu0 0.0
      %274 = vmatpush1.msra.mxu0 0.0
      %275 = vmatprep.subr.mxu0 0.0
      %276 = vmatpush1.msra.mxu0 0.0
      %277 = vmatprep.subr.mxu0 0.0
      %278 = vmatpush1.msra.mxu0 0.0
      %279 = vmatprep.subr.mxu0 0.0
      %280 = vmatpush1.msra.mxu0 0.0
      %281 = vmatprep.subr.mxu0 0.0
      %282 = vmatpush1.msra.mxu0 0.0
      %283 = vmatprep.subr.mxu0 0.0
      %284 = vmatpush1.msra.mxu0 0.0
      %285 = vmatprep.subr.mxu0 0.0
      %286 = vmatpush1.msra.mxu0 0.0
      %287 = vmatprep.subr.mxu0 0.0
      %288 = vmatpush1.msra.mxu0 0.0
      %289 = vmatprep.subr.mxu0 0.0
      %290 = vmatpush1.msra.mxu0 0.0
      %291 = vmatprep.subr.mxu0 0.0
      %292 = vmatpush1.msra.mxu0 0.0
      %293 = vmatprep.subr.mxu0 0.0
      %294 = vmatpush1.msra.mxu0 0.0
      %295 = vmatprep.subr.mxu0 0.0
      %296 = vmatpush1.msra.mxu0 0.0
      %297 = vmatprep.subr.mxu0 0.0
      %298 = vmatpush1.msra.mxu0 0.0
      %299 = vmatprep.subr.mxu0 0.0
      %300 = vmatpush1.msra.mxu0 0.0
      %301 = vmatprep.subr.mxu0 0.0
      %302 = vmatpush1.msra.mxu0 0.0
      %303 = vmatprep.subr.mxu0 0.0
      %304 = vmatpush1.msra.mxu0 0.0
      %305 = vmatprep.subr.mxu0 0.0
      %306 = vmatpush1.msra.mxu0 0.0
      %307 = vmatprep.subr.mxu0 0.0
      %308 = vmatpush1.msra.mxu0 0.0
      %309 = vmatprep.subr.mxu0 0.0
      %310 = vmatpush1.msra.mxu0 0.0
      %311 = vmatprep.subr.mxu0 0.0
      %312 = vmatpush1.msra.mxu0 0.0
      %313 = vmatprep.subr.mxu0 0.0
      %314 = vmatpush1.msra.mxu0 0.0
      %315 = vmatprep.subr.mxu0 0.0
      %316 = vmatpush1.msra.mxu0 0.0
      %317 = vmatprep.subr.mxu0 0.0
      %318 = vmatpush1.msra.mxu0 0.0
      %319 = vmatprep.subr.mxu0 0.0
      %320 = vmatpush1.msra.mxu0 0.0
      %321 = vmatprep.subr.mxu0 0.0
      %322 = vmatpush1.msra.mxu0 0.0
      %323 = vmatprep.subr.mxu0 0.0
      %324 = vmatpush1.msra.mxu0 0.0
      %325 = vmatprep.subr.mxu0 0.0
      %326 = vmatpush1.msra.mxu0 0.0
      %327 = vmatprep.subr.mxu0 0.0
      %328 = vmatpush1.msra.mxu0 0.0
      %329 = vmatprep.subr.mxu0 0.0
      %330 = vmatpush1.msra.mxu0 0.0
      %331 = vmatprep.subr.mxu0 0.0
      %332 = vmatpush1.msra.mxu0 0.0
      %333 = vmatprep.mubr.f32.mxu0 0.0
      %334 = vmatmul.mubr.f32.gmra.mrb[0].mxu0 %v261
      %v335 = vpop.f32.mrb[0].mxu0
      %v336 = vadd.f32 0.0, %v335
      %v337 = vpop.f32.mrb[0].mxu0
      %338 = vmatprep.mubr.f32.mxu0 0.0
      %339 = vmatmul.mubr.f32.gmra.mrb[0].mxu0 %v264
      %v340 = vpop.f32.mrb[0].mxu0
      %v341 = vadd.f32 0.0, %v340
      %v342 = vpop.f32.mrb[0].mxu0
      %343 = vdwg.mxu0
      %v345 = vsel %vm259, %v245, 0
      %v348 = vsel %vm259, %v246, 0
      %v350 = vsel %vm266, %v248, 0
      %352 = vmatprep.subr.mxu0 0.0
      %353 = vmatpush1.msra.mxu0 %v247
      %354 = vmatprep.subr.mxu0 0.0
      %355 = vmatpush1.msra.mxu0 %v350
      %356 = vmatprep.subr.mxu0 0.0
      %357 = vmatpush1.msra.mxu0 0.0
      %358 = vmatprep.subr.mxu0 0.0
      %359 = vmatpush1.msra.mxu0 0.0
      %360 = vmatprep.subr.mxu0 0.0
      %361 = vmatpush1.msra.mxu0 0.0
      %362 = vmatprep.subr.mxu0 0.0
      %363 = vmatpush1.msra.mxu0 0.0
      %364 = vmatprep.subr.mxu0 0.0
      %365 = vmatpush1.msra.mxu0 0.0
      %366 = vmatprep.subr.mxu0 0.0
      %367 = vmatpush1.msra.mxu0 0.0
      %368 = vmatprep.subr.mxu0 0.0
      %369 = vmatpush1.msra.mxu0 0.0
      %370 = vmatprep.subr.mxu0 0.0
      %371 = vmatpush1.msra.mxu0 0.0
      %372 = vmatprep.subr.mxu0 0.0
      %373 = vmatpush1.msra.mxu0 0.0
      %374 = vmatprep.subr.mxu0 0.0
      %375 = vmatpush1.msra.mxu0 0.0
      %376 = vmatprep.subr.mxu0 0.0
      %377 = vmatpush1.msra.mxu0 0.0
      %378 = vmatprep.subr.mxu0 0.0
      %379 = vmatpush1.msra.mxu0 0.0
      %380 = vmatprep.subr.mxu0 0.0
      %381 = vmatpush1.msra.mxu0 0.0
      %382 = vmatprep.subr.mxu0 0.0
      %383 = vmatpush1.msra.mxu0 0.0
      %384 = vmatprep.subr.mxu0 0.0
      %385 = vmatpush1.msra.mxu0 0.0
      %386 = vmatprep.subr.mxu0 0.0
      %387 = vmatpush1.msra.mxu0 0.0
      %388 = vmatprep.subr.mxu0 0.0
      %389 = vmatpush1.msra.mxu0 0.0
      %390 = vmatprep.subr.mxu0 0.0
      %391 = vmatpush1.msra.mxu0 0.0
      %392 = vmatprep.subr.mxu0 0.0
      %393 = vmatpush1.msra.mxu0 0.0
      %394 = vmatprep.subr.mxu0 0.0
      %395 = vmatpush1.msra.mxu0 0.0
      %396 = vmatprep.subr.mxu0 0.0
      %397 = vmatpush1.msra.mxu0 0.0
      %398 = vmatprep.subr.mxu0 0.0
      %399 = vmatpush1.msra.mxu0 0.0
      %400 = vmatprep.subr.mxu0 0.0
      %401 = vmatpush1.msra.mxu0 0.0
      %402 = vmatprep.subr.mxu0 0.0
      %403 = vmatpush1.msra.mxu0 0.0
      %404 = vmatprep.subr.mxu0 0.0
      %405 = vmatpush1.msra.mxu0 0.0
      %406 = vmatprep.subr.mxu0 0.0
      %407 = vmatpush1.msra.mxu0 0.0
      %408 = vmatprep.subr.mxu0 0.0
      %409 = vmatpush1.msra.mxu0 0.0
      %410 = vmatprep.subr.mxu0 0.0
      %411 = vmatpush1.msra.mxu0 0.0
      %412 = vmatprep.subr.mxu0 0.0
      %413 = vmatpush1.msra.mxu0 0.0
      %414 = vmatprep.subr.mxu0 0.0
      %415 = vmatpush1.msra.mxu0 0.0
      %416 = vmatprep.mubr.f32.mxu0 0.0
      %417 = vmatmul.mubr.f32.gmra.mrb[0].mxu0 %v345
      %v418 = vpop.f32.mrb[0].mxu0
      %v419 = vadd.f32 %v336, %v418
      %v420 = vpop.f32.mrb[0].mxu0
      %421 = vmatprep.mubr.f32.mxu0 0.0
      %422 = vmatmul.mubr.f32.gmra.mrb[0].mxu0 %v348
      %v423 = vpop.f32.mrb[0].mxu0
      %v424 = vadd.f32 %v341, %v423
      %v425 = vpop.f32.mrb[0].mxu0
      %426 = vdwg.mxu0
      %s427 = scalar_lea.vmem %s1, 32
      %v428 = vld [vmem:[%s427] sm:$0xff]
      %v429 = vld [vmem:[%s427 + $0x8] sm:$0x3]
      %430 = vrot.lane.b32.xlu0 %v247, 126
      %v431 = vpop.permute.xlu0 %430
      %432 = vrot.lane.b32.xlu0 %v248, 126
      %v433 = vpop.permute.xlu0 %432
      %v436 = vsel %vm259, %v428, 0
      %v439 = vsel %vm259, %v429, 0
      %v441 = vsel %vm266, %v433, 0
      %443 = vmatprep.subr.mxu0 0.0
      %444 = vmatpush1.msra.mxu0 %v431
      %445 = vmatprep.subr.mxu0 0.0
      %446 = vmatpush1.msra.mxu0 %v441
      %447 = vmatprep.subr.mxu0 0.0
      %448 = vmatpush1.msra.mxu0 0.0
      %449 = vmatprep.subr.mxu0 0.0
      %450 = vmatpush1.msra.mxu0 0.0
      %451 = vmatprep.subr.mxu0 0.0
      %452 = vmatpush1.msra.mxu0 0.0
      %453 = vmatprep.subr.mxu0 0.0
      %454 = vmatpush1.msra.mxu0 0.0
      %455 = vmatprep.subr.mxu0 0.0
      %456 = vmatpush1.msra.mxu0 0.0
      %457 = vmatprep.subr.mxu0 0.0
      %458 = vmatpush1.msra.mxu0 0.0
      %459 = vmatprep.subr.mxu0 0.0
      %460 = vmatpush1.msra.mxu0 0.0
      %461 = vmatprep.subr.mxu0 0.0
      %462 = vmatpush1.msra.mxu0 0.0
      %463 = vmatprep.subr.mxu0 0.0
      %464 = vmatpush1.msra.mxu0 0.0
      %465 = vmatprep.subr.mxu0 0.0
      %466 = vmatpush1.msra.mxu0 0.0
      %467 = vmatprep.subr.mxu0 0.0
      %468 = vmatpush1.msra.mxu0 0.0
      %469 = vmatprep.subr.mxu0 0.0
      %470 = vmatpush1.msra.mxu0 0.0
      %471 = vmatprep.subr.mxu0 0.0
      %472 = vmatpush1.msra.mxu0 0.0
      %473 = vmatprep.subr.mxu0 0.0
      %474 = vmatpush1.msra.mxu0 0.0
      %475 = vmatprep.subr.mxu0 0.0
      %476 = vmatpush1.msra.mxu0 0.0
      %477 = vmatprep.subr.mxu0 0.0
      %478 = vmatpush1.msra.mxu0 0.0
      %479 = vmatprep.subr.mxu0 0.0
      %480 = vmatpush1.msra.mxu0 0.0
      %481 = vmatprep.subr.mxu0 0.0
      %482 = vmatpush1.msra.mxu0 0.0
      %483 = vmatprep.subr.mxu0 0.0
      %484 = vmatpush1.msra.mxu0 0.0
      %485 = vmatprep.subr.mxu0 0.0
      %486 = vmatpush1.msra.mxu0 0.0
      %487 = vmatprep.subr.mxu0 0.0
      %488 = vmatpush1.msra.mxu0 0.0
      %489 = vmatprep.subr.mxu0 0.0
      %490 = vmatpush1.msra.mxu0 0.0
      %491 = vmatprep.subr.mxu0 0.0
      %492 = vmatpush1.msra.mxu0 0.0
      %493 = vmatprep.subr.mxu0 0.0
      %494 = vmatpush1.msra.mxu0 0.0
      %495 = vmatprep.subr.mxu0 0.0
      %496 = vmatpush1.msra.mxu0 0.0
      %497 = vmatprep.subr.mxu0 0.0
      %498 = vmatpush1.msra.mxu0 0.0
      %499 = vmatprep.subr.mxu0 0.0
      %500 = vmatpush1.msra.mxu0 0.0
      %501 = vmatprep.subr.mxu0 0.0
      %502 = vmatpush1.msra.mxu0 0.0
      %503 = vmatprep.subr.mxu0 0.0
      %504 = vmatpush1.msra.mxu0 0.0
      %505 = vmatprep.subr.mxu0 0.0
      %506 = vmatpush1.msra.mxu0 0.0
      %507 = vmatprep.mubr.f32.mxu0 0.0
      %508 = vmatmul.mubr.f32.gmra.mrb[0].mxu0 %v436
      %v509 = vpop.f32.mrb[0].mxu0
      %v510 = vadd.f32 0.0, %v509
      %v511 = vpop.f32.mrb[0].mxu0
      %512 = vmatprep.mubr.f32.mxu0 0.0
      %513 = vmatmul.mubr.f32.gmra.mrb[0].mxu0 %v439
      %v514 = vpop.f32.mrb[0].mxu0
      %v515 = vadd.f32 0.0, %v514
      %v516 = vpop.f32.mrb[0].mxu0
      %517 = vdwg.mxu0
      %v518 = vadd.f32 %v419, %v510
      %v519 = vadd.f32 %v424, %v515
      %s520 = scalar_lea.vmem %s1, 48
      %v521 = vld [vmem:[%s520] sm:$0xff]
      %v522 = vld [vmem:[%s520 + $0x8] sm:$0x3]
      %523 = vrot.lane.b32.xlu0 %v247, 125
      %v524 = vpop.permute.xlu0 %523
      %525 = vrot.lane.b32.xlu0 %v248, 125
      %v526 = vpop.permute.xlu0 %525
      %v529 = vsel %vm259, %v521, 0
      %v532 = vsel %vm259, %v522, 0
      %v534 = vsel %vm266, %v526, 0
      %536 = vmatprep.subr.mxu0 0.0
      %537 = vmatpush1.msra.mxu0 %v524
      %538 = vmatprep.subr.mxu0 0.0
      %539 = vmatpush1.msra.mxu0 %v534
      %540 = vmatprep.subr.mxu0 0.0
      %541 = vmatpush1.msra.mxu0 0.0
      %542 = vmatprep.subr.mxu0 0.0
      %543 = vmatpush1.msra.mxu0 0.0
      %544 = vmatprep.subr.mxu0 0.0
      %545 = vmatpush1.msra.mxu0 0.0
      %546 = vmatprep.subr.mxu0 0.0
      %547 = vmatpush1.msra.mxu0 0.0
      %548 = vmatprep.subr.mxu0 0.0
      %549 = vmatpush1.msra.mxu0 0.0
      %550 = vmatprep.subr.mxu0 0.0
      %551 = vmatpush1.msra.mxu0 0.0
      %552 = vmatprep.subr.mxu0 0.0
      %553 = vmatpush1.msra.mxu0 0.0
      %554 = vmatprep.subr.mxu0 0.0
      %555 = vmatpush1.msra.mxu0 0.0
      %556 = vmatprep.subr.mxu0 0.0
      %557 = vmatpush1.msra.mxu0 0.0
      %558 = vmatprep.subr.mxu0 0.0
      %559 = vmatpush1.msra.mxu0 0.0
      %560 = vmatprep.subr.mxu0 0.0
      %561 = vmatpush1.msra.mxu0 0.0
      %562 = vmatprep.subr.mxu0 0.0
      %563 = vmatpush1.msra.mxu0 0.0
      %564 = vmatprep.subr.mxu0 0.0
      %565 = vmatpush1.msra.mxu0 0.0
      %566 = vmatprep.subr.mxu0 0.0
      %567 = vmatpush1.msra.mxu0 0.0
      %568 = vmatprep.subr.mxu0 0.0
      %569 = vmatpush1.msra.mxu0 0.0
      %570 = vmatprep.subr.mxu0 0.0
      %571 = vmatpush1.msra.mxu0 0.0
      %572 = vmatprep.subr.mxu0 0.0
      %573 = vmatpush1.msra.mxu0 0.0
      %574 = vmatprep.subr.mxu0 0.0
      %575 = vmatpush1.msra.mxu0 0.0
      %576 = vmatprep.subr.mxu0 0.0
      %577 = vmatpush1.msra.mxu0 0.0
      %578 = vmatprep.subr.mxu0 0.0
      %579 = vmatpush1.msra.mxu0 0.0
      %580 = vmatprep.subr.mxu0 0.0
      %581 = vmatpush1.msra.mxu0 0.0
      %582 = vmatprep.subr.mxu0 0.0
      %583 = vmatpush1.msra.mxu0 0.0
      %584 = vmatprep.subr.mxu0 0.0
      %585 = vmatpush1.msra.mxu0 0.0
      %586 = vmatprep.subr.mxu0 0.0
      %587 = vmatpush1.msra.mxu0 0.0
      %588 = vmatprep.subr.mxu0 0.0
      %589 = vmatpush1.msra.mxu0 0.0
      %590 = vmatprep.subr.mxu0 0.0
      %591 = vmatpush1.msra.mxu0 0.0
      %592 = vmatprep.subr.mxu0 0.0
      %593 = vmatpush1.msra.mxu0 0.0
      %594 = vmatprep.subr.mxu0 0.0
      %595 = vmatpush1.msra.mxu0 0.0
      %596 = vmatprep.subr.mxu0 0.0
      %597 = vmatpush1.msra.mxu0 0.0
      %598 = vmatprep.subr.mxu0 0.0
      %599 = vmatpush1.msra.mxu0 0.0
      %600 = vmatprep.mubr.f32.mxu0 0.0
      %601 = vmatmul.mubr.f32.gmra.mrb[0].mxu0 %v529
      %v602 = vpop.f32.mrb[0].mxu0
      %v603 = vadd.f32 0.0, %v602
      %v604 = vpop.f32.mrb[0].mxu0
      %605 = vmatprep.mubr.f32.mxu0 0.0
      %606 = vmatmul.mubr.f32.gmra.mrb[0].mxu0 %v532
      %v607 = vpop.f32.mrb[0].mxu0
      %v608 = vadd.f32 0.0, %v607
      %v609 = vpop.f32.mrb[0].mxu0
      %610 = vdwg.mxu0
      %v611 = vadd.f32 %v518, %v603
      %v612 = vadd.f32 %v519, %v608
      %vm613 = vcmask 130048
      %614 = vst.msk [vmem:[%s212] sm:$0xff] %vm613, %v611
      %vm615 = vcmask 123904
      %616 = vst.msk [vmem:[%s212 + $0x8] sm:$0x3] %vm615, %v612
      %v617 = vsel %vm613, %v611, 0.0
      %618 = vadd.xlane.f32.xlu0 %v617
      %v619 = vpop.xlane.xlu0 %618
      %v620 = vsel %vm615, %v612, 0.0
      %621 = vadd.xlane.f32.xlu0 %v620
      %v622 = vpop.xlane.xlu0 %621
      %623 = vst.msk [vmem:[%s217] sm:$0xff] %vm223, %v619
      %624 = vst.msk [vmem:[%s217 + $0x8] sm:$0x3] %vm225, %v622
      %v625 = vmul.f32 %v611, %v611
      %v626 = vmul.f32 %v612, %v612
      %v627 = vsel %vm613, %v625, 0.0
      %628 = vadd.xlane.f32.xlu0 %v627
      %v629 = vpop.xlane.xlu0 %628
      %v630 = vsel %vm615, %v626, 0.0
      %631 = vadd.xlane.f32.xlu0 %v630
      %v632 = vpop.xlane.xlu0 %631
      %633 = vst.msk [vmem:[%s222] sm:$0xff] %vm223, %v629
      %634 = vst.msk [vmem:[%s222 + $0x8] sm:$0x3] %vm225, %v632
      %p635 = scmp.lt.s32.totalorder %s16, 1
      %s636 = scalar_select %p635, %s16, 1
      %s637 = smul.addr %s636, 2
      %s638 = smul.addr %s637, 8
      %s639 = scalar_lea.vmem %s2, %s638
      %p640 = scmp.lt.s32.totalorder %s16, 1
      %s641 = scalar_select %p640, %s16, 1
      %s642 = smul.addr %s641, 2
      %s643 = smul.addr %s642, 8
      %s644 = scalar_lea.vmem %s3, %s643
      %p645 = scmp.lt.s32.totalorder %s16, 1
      %s646 = scalar_select %p645, %s16, 1
      %s647 = smul.addr %s646, 2
      %s648 = smul.addr %s647, 8
      %s649 = scalar_lea.vmem %s4, %s648
      // Predicated region
      $region29: #{tpu_custom_call.1} parent=27 // pred_check
        %p650 = pneg %p81
      $region30: #{tpu_custom_call.1} parent=27 // pred_check_branch
        %652 = sbr.rel (%p650) target = $region32
      $region31: #{tpu_custom_call.1} parent=27 // pred_region
        _
      $region32: #{tpu_custom_call.1} parent=27 // pred_fallthru
        _
      // Predicated region
      $region33: #{tpu_custom_call.1} parent=27 // pred_check
        %p653 = pneg %p107
      $region34: #{tpu_custom_call.1} parent=27 // pred_check_branch
        %655 = sbr.rel (%p653) target = $region36
      $region35: #{tpu_custom_call.1} parent=27 // pred_region
        _
      $region36: #{tpu_custom_call.1} parent=27 // pred_fallthru
        _
      // Predicated region
      $region37: #{tpu_custom_call.1} parent=27 // pred_check
        %p656 = pneg %p133
      $region38: #{tpu_custom_call.1} parent=27 // pred_check_branch
        %658 = sbr.rel (%p656) target = $region40
      $region39: #{tpu_custom_call.1} parent=27 // pred_region
        _
      $region40: #{tpu_custom_call.1} parent=27 // pred_fallthru
        _
    $region28: #{tpu_custom_call.1} parent=5 // pred_fallthru
      _
    %p659 = scmp.le.s32.totalorder 2, %s11
    // Predicated region
    $region41: #{tpu_custom_call.1} parent=5 // pred_check
      %p660 = pneg %p659
    $region42: #{tpu_custom_call.1} parent=5 // pred_check_branch
      %662 = sbr.rel (%p660) target = $region44
    $region43: #{tpu_custom_call.1} parent=5 // pred_region
      %s663 = ssub.s32 %s11, 2
      // Predicated region
      $region45: #{tpu_custom_call.1} parent=43 // pred_check
        %p664 = pneg %p87
      $region46: #{tpu_custom_call.1} parent=43 // pred_check_branch
        %666 = sbr.rel (%p664) target = $region48
      $region47: #{tpu_custom_call.1} parent=43 // pred_region
        %p667 = scmp.lt.s32.totalorder %s17, 1
        %s668 = scalar_select %p667, %s17, 1
        %s669 = smul.addr %s668, 2
        %s670 = smul.addr %s669, 8
        %s671 = scalar_lea.vmem %s2, %s670
      $region48: #{tpu_custom_call.1} parent=43 // pred_fallthru
        _
      // Predicated region
      $region49: #{tpu_custom_call.1} parent=43 // pred_check
        %p672 = pneg %p113
      $region50: #{tpu_custom_call.1} parent=43 // pred_check_branch
        %674 = sbr.rel (%p672) target = $region52
      $region51: #{tpu_custom_call.1} parent=43 // pred_region
        %p675 = scmp.lt.s32.totalorder %s17, 1
        %s676 = scalar_select %p675, %s17, 1
        %s677 = smul.addr %s676, 2
        %s678 = smul.addr %s677, 8
        %s679 = scalar_lea.vmem %s3, %s678
      $region52: #{tpu_custom_call.1} parent=43 // pred_fallthru
        _
      // Predicated region
      $region53: #{tpu_custom_call.1} parent=43 // pred_check
        %p680 = pneg %p139
      $region54: #{tpu_custom_call.1} parent=43 // pred_check_branch
        %682 = sbr.rel (%p680) target = $region56
      $region55: #{tpu_custom_call.1} parent=43 // pred_region
        %p683 = scmp.lt.s32.totalorder %s17, 1
        %s684 = scalar_select %p683, %s17, 1
        %s685 = smul.addr %s684, 2
        %s686 = smul.addr %s685, 8
        %s687 = scalar_lea.vmem %s4, %s686
      $region56: #{tpu_custom_call.1} parent=43 // pred_fallthru
        _
    $region44: #{tpu_custom_call.1} parent=5 // pred_fallthru
      _
  $region6: #{tpu_custom_call.1} parent=0 // loop_footer
    %s15 = sadd.s32 1, %s11
  $region7: #{tpu_custom_call.1} parent=0 // loop_footer_branch
    %10 = sbr.rel target = $region3
  $region8: #{tpu_custom_call.1} parent=0 // loop_exit
    _

</llo_original>
